<compile_context>
chip_gen: v5e
topology: v5e:2x2
jax: 0.10.0
libtpu: 0.0.40
codegen_flags: <defaults>
</compile_context>

<pallas_src>
import functools

import jax
import jax.numpy as jnp
from jax.experimental import pallas as pl
from jax.experimental.pallas import tpu as pltpu

KERNEL_SIZE = 31
PAD = (KERNEL_SIZE - 1) // 2
IN_CHANNELS = 2


def _round_up(x, m):
    return ((x + m - 1) // m) * m


def fuse_location_weights(w_conv, w_dense):
    """Fold the conv weight into the dense weight: a single (K*C -> A) GEMM weight.

    Hoisted out of the per-call path (weights are static) and computed with
    HIGHEST precision so the fusion error does not leak into every output.
      w_conv:  (F, C, K)   PyTorch Conv1d weight layout (no bias)
      w_dense: (A, F)      PyTorch Linear weight layout (no bias)
    Returns (KC_pad, A) float32, rows >= K*C zero-padded (KC_pad = round_up(K*C, 8)).
    """
    F, C, K = w_conv.shape
    A = w_dense.shape[0]
    # im2col column ordering inside the kernel is j = k*C + c.
    wc = jnp.transpose(w_conv, (2, 1, 0)).reshape(K * C, F)          # (K*C, F)
    wd = jnp.transpose(w_dense, (1, 0))                              # (F, A)
    w_fused = jnp.dot(wc, wd, precision=jax.lax.Precision.HIGHEST)   # (K*C, A)
    kc_pad = _round_up(K * C, 8)
    return jnp.pad(w_fused, ((0, kc_pad - K * C), (0, 0))).astype(jnp.float32)


def _location_kernel(x_ref, w_ref, o_ref, col_ref, *, tt, k_size, c_in, kc, kc_pad):
    # x_ref:   (T_alloc + 2*PAD, C)  zero-padded channels-last input, this batch
    # w_ref:   (KC_pad, A)           fused conv@dense weight (rows >= K*C are zero)
    # o_ref:   (TT, A)               output tile (batch dim squeezed)
    # col_ref: (TT, KC_pad)          VMEM scratch: im2col operand
    base = pl.multiple_of(pl.program_id(1) * tt, tt)

    # Padded tail columns are multiplied by zero weight rows, but stale VMEM
    # could hold NaNs (NaN * 0 = NaN) -> clear them.
    if kc_pad > kc:
        col_ref[:, kc:] = jnp.zeros((tt, kc_pad - kc), col_ref.dtype)

    # In-kernel im2col: 31 shifted sublane copies into the VMEM scratch.
    #   col[t, k*C + c] = x_pad[base + t + k, c]
    for k in range(k_size):
        col_ref[:, k * c_in:(k + 1) * c_in] = x_ref[pl.ds(base + k, tt), :]

    # Single fused GEMM (conv + dense), f32 accumulate, unpadded lane store.
    o_ref[...] = jnp.dot(
        col_ref[...], w_ref[...], preferred_element_type=jnp.float32
    ).astype(o_ref.dtype)


@jax.jit
def location_layer_forward(attention_cat, w_fused):
    """attention_cat: (B, 2, T) float32
       w_fused:       (KC_pad, A) from fuse_location_weights (precomputed once)
       returns        (B, T, A)  == PyTorch LocationLayer.forward output
    """
    B, C, T = attention_cat.shape
    KC_pad, A = w_fused.shape
    K = KERNEL_SIZE
    KC = K * C

    # Large time tile (overhead-bound at small tiles).  Keep >= 2 parallel grid
    # blocks when possible (v7x has 2 TensorCores): B >= 2 already gives that,
    # otherwise force >= 2 t-tiles once T exceeds the cap.
    cap = 2048 if B >= 2 else 1024
    TT = T if T <= cap else cap
    nt = pl.cdiv(T, TT)
    T_alloc = nt * TT

    # Raw input, channels-last, zero-padded in time ('same' conv + ragged edge tile).
    # This is the only host-side data-movement op; no im2col is materialized.
    x = jnp.transpose(attention_cat, (0, 2, 1))                        # (B, T, C)
    x = jnp.pad(x, ((0, 0), (PAD, PAD + (T_alloc - T)), (0, 0)))       # (B, Tp, C)
    Tp = T_alloc + 2 * PAD

    kernel = functools.partial(
        _location_kernel, tt=TT, k_size=K, c_in=C, kc=KC, kc_pad=KC_pad)

    out = pl.pallas_call(
        kernel,
        out_shape=jax.ShapeDtypeStruct((B, T, A), jnp.float32),
        grid_spec=pltpu.PrefetchScalarGridSpec(
            num_scalar_prefetch=0,
            grid=(B, nt),
            in_specs=[
                # Full padded time axis for this batch; stays VMEM-resident
                # across t-tiles (block index does not change with i).
                pl.BlockSpec((None, Tp, C), lambda b, i: (b, 0, 0)),
                # Tiny fused weight, VMEM-resident.
                pl.BlockSpec((KC_pad, A), lambda b, i: (0, 0)),
            ],
            # Unpadded output: last block dim == full array dim (A), no A_pad,
            # no post-kernel slice.
            out_specs=pl.BlockSpec((None, TT, A), lambda b, i: (b, i, 0)),
            scratch_shapes=[pltpu.VMEM((TT, KC_pad), jnp.float32)],
        ),
        compiler_params=pltpu.CompilerParams(
            dimension_semantics=("parallel", "parallel")),
    )(x, w_fused)
    return out


def _xavier_uniform_linear(key, shape, gain):
    fan_out, fan_in = shape
    bound = gain * jnp.sqrt(6.0 / (fan_in + fan_out))
    return jax.random.uniform(key, shape, jnp.float32, -bound, bound)


def _xavier_uniform_conv1d(key, shape, gain):
    # PyTorch convention for (F, C, K): fan_in = C*K, fan_out = F*K
    F, C, K = shape
    fan_in, fan_out = C * K, F * K
    bound = gain * jnp.sqrt(6.0 / (fan_in + fan_out))
    return jax.random.uniform(key, shape, jnp.float32, -bound, bound)


def _reference(attention_cat, w_conv, w_dense):
    # Pure-JAX reference (unfused) for the correctness check.
    conv = jax.lax.conv_general_dilated(
        attention_cat, w_conv, window_strides=(1,), padding=[(PAD, PAD)],
        dimension_numbers=("NCH", "OIH", "NCH"),
        precision=jax.lax.Precision.HIGHEST)                 # (B, F, T)
    conv = jnp.transpose(conv, (0, 2, 1))                    # (B, T, F)
    return jnp.dot(conv, w_dense.T,
                   precision=jax.lax.Precision.HIGHEST)      # (B, T, A)


if __name__ == "__main__":
    B, T = 2, 16
    attention_n_filters = 8
    attention_dim = 32

    key = jax.random.PRNGKey(0)
    k1, k2, k3 = jax.random.split(key, 3)

    # Deterministic parameter init (module __init__ shapes).
    w_conv = _xavier_uniform_conv1d(
        k1, (attention_n_filters, IN_CHANNELS, KERNEL_SIZE), gain=1.0)
    w_dense = _xavier_uniform_linear(
        k2, (attention_dim, attention_n_filters), gain=5.0 / 3.0)  # tanh gain

    attention_cat = jax.random.normal(k3, (B, IN_CHANNELS, T), jnp.float32)

    # Weight fusion is computed ONCE (hoisted out of the per-call path).
    w_fused = jax.block_until_ready(fuse_location_weights(w_conv, w_dense))

    out = location_layer_forward(attention_cat, w_fused)
    out = jax.block_until_ready(out)

    ref = _reference(attention_cat, w_conv, w_dense)
    assert out.shape == (B, T, attention_dim)
    assert jnp.allclose(out, ref, atol=1e-3, rtol=1e-3), \
        float(jnp.max(jnp.abs(out - ref)))

    print("KERNEL_OK")
</pallas_src>

<mosaic_0001>
module attributes {stable_mosaic.version = 11 : i64} {
  func.func @_location_kernel(%arg0: i32, %arg1: i32, %arg2: memref<1x46x2xf32, #tpu.memory_space<vmem>>, %arg3: memref<64x32xf32, #tpu.memory_space<vmem>>, %arg4: memref<1x16x32xf32, #tpu.memory_space<vmem>>, %arg5: memref<16x64xf32, #tpu.memory_space<vmem>>) attributes {dimension_semantics = [#tpu.dimension_semantics<parallel>, #tpu.dimension_semantics<parallel>], iteration_bounds = array<i64: 2, 1>, scalar_prefetch = 0 : i64, scratch_operands = 1 : i64, tpu.core_type = #tpu.core_type<tc>, window_params = [{transform_indices = @transform_0, window_bounds = array<i64: 1, 46, 2>}, {pipeline_mode = #tpu.pipeline_mode<synchronous>, transform_indices = @transform_1, window_bounds = array<i64: 64, 32>}, {transform_indices = @transform_2, window_bounds = array<i64: 1, 16, 32>}]} {
    %c16_i32 = arith.constant 16 : i32
    %0 = arith.muli %arg1, %c16_i32 : i32
    %1 = tpu.assume_multiple %0, 16 : i32
    %cst = arith.constant 0.000000e+00 : f32
    %2 = vector.broadcast %cst : f32 to vector<16x2xf32>
    %c0 = arith.constant 0 : index
    %c62 = arith.constant 62 : index
    %3 = vector.load %arg5[%c0, %c62] : memref<16x64xf32, #tpu.memory_space<vmem>>, vector<16x2xf32>
    tpu.vector_store %arg5[%c0, %c62], %2 {strides = array<i32>} : memref<16x64xf32, #tpu.memory_space<vmem>>, vector<16x2xf32>,
    %c0_i32 = arith.constant 0 : i32
    %4 = arith.addi %1, %c0_i32 : i32
    %c0_0 = arith.constant 0 : index
    %5 = arith.index_cast %4 : i32 to index
    %c0_1 = arith.constant 0 : index
    %6 = vector.load %arg2[%c0_0, %5, %c0_1] : memref<1x46x2xf32, #tpu.memory_space<vmem>>, vector<1x16x2xf32>
    %7 = vector.shape_cast %6 : vector<1x16x2xf32> to vector<16x2xf32>
    %c0_2 = arith.constant 0 : index
    %c0_3 = arith.constant 0 : index
    %8 = vector.load %arg5[%c0_2, %c0_3] : memref<16x64xf32, #tpu.memory_space<vmem>>, vector<16x2xf32>
    tpu.vector_store %arg5[%c0_2, %c0_3], %7 {strides = array<i32>} : memref<16x64xf32, #tpu.memory_space<vmem>>, vector<16x2xf32>,
    %c1_i32 = arith.constant 1 : i32
    %9 = arith.addi %1, %c1_i32 : i32
    %c0_4 = arith.constant 0 : index
    %10 = arith.index_cast %9 : i32 to index
    %c0_5 = arith.constant 0 : index
    %11 = vector.load %arg2[%c0_4, %10, %c0_5] : memref<1x46x2xf32, #tpu.memory_space<vmem>>, vector<1x16x2xf32>
    %12 = vector.shape_cast %11 : vector<1x16x2xf32> to vector<16x2xf32>
    %c0_6 = arith.constant 0 : index
    %c2 = arith.constant 2 : index
    %13 = vector.load %arg5[%c0_6, %c2] : memref<16x64xf32, #tpu.memory_space<vmem>>, vector<16x2xf32>
    tpu.vector_store %arg5[%c0_6, %c2], %12 {strides = array<i32>} : memref<16x64xf32, #tpu.memory_space<vmem>>, vector<16x2xf32>,
    %c2_i32 = arith.constant 2 : i32
    %14 = arith.addi %1, %c2_i32 : i32
    %c0_7 = arith.constant 0 : index
    %15 = arith.index_cast %14 : i32 to index
    %c0_8 = arith.constant 0 : index
    %16 = vector.load %arg2[%c0_7, %15, %c0_8] : memref<1x46x2xf32, #tpu.memory_space<vmem>>, vector<1x16x2xf32>
    %17 = vector.shape_cast %16 : vector<1x16x2xf32> to vector<16x2xf32>
    %c0_9 = arith.constant 0 : index
    %c4 = arith.constant 4 : index
    %18 = vector.load %arg5[%c0_9, %c4] : memref<16x64xf32, #tpu.memory_space<vmem>>, vector<16x2xf32>
    tpu.vector_store %arg5[%c0_9, %c4], %17 {strides = array<i32>} : memref<16x64xf32, #tpu.memory_space<vmem>>, vector<16x2xf32>,
    %c3_i32 = arith.constant 3 : i32
    %19 = arith.addi %1, %c3_i32 : i32
    %c0_10 = arith.constant 0 : index
    %20 = arith.index_cast %19 : i32 to index
    %c0_11 = arith.constant 0 : index
    %21 = vector.load %arg2[%c0_10, %20, %c0_11] : memref<1x46x2xf32, #tpu.memory_space<vmem>>, vector<1x16x2xf32>
    %22 = vector.shape_cast %21 : vector<1x16x2xf32> to vector<16x2xf32>
    %c0_12 = arith.constant 0 : index
    %c6 = arith.constant 6 : index
    %23 = vector.load %arg5[%c0_12, %c6] : memref<16x64xf32, #tpu.memory_space<vmem>>, vector<16x2xf32>
    tpu.vector_store %arg5[%c0_12, %c6], %22 {strides = array<i32>} : memref<16x64xf32, #tpu.memory_space<vmem>>, vector<16x2xf32>,
    %c4_i32 = arith.constant 4 : i32
    %24 = arith.addi %1, %c4_i32 : i32
    %c0_13 = arith.constant 0 : index
    %25 = arith.index_cast %24 : i32 to index
    %c0_14 = arith.constant 0 : index
    %26 = vector.load %arg2[%c0_13, %25, %c0_14] : memref<1x46x2xf32, #tpu.memory_space<vmem>>, vector<1x16x2xf32>
    %27 = vector.shape_cast %26 : vector<1x16x2xf32> to vector<16x2xf32>
    %c0_15 = arith.constant 0 : index
    %c8 = arith.constant 8 : index
    %28 = vector.load %arg5[%c0_15, %c8] : memref<16x64xf32, #tpu.memory_space<vmem>>, vector<16x2xf32>
    tpu.vector_store %arg5[%c0_15, %c8], %27 {strides = array<i32>} : memref<16x64xf32, #tpu.memory_space<vmem>>, vector<16x2xf32>,
    %c5_i32 = arith.constant 5 : i32
    %29 = arith.addi %1, %c5_i32 : i32
    %c0_16 = arith.constant 0 : index
    %30 = arith.index_cast %29 : i32 to index
    %c0_17 = arith.constant 0 : index
    %31 = vector.load %arg2[%c0_16, %30, %c0_17] : memref<1x46x2xf32, #tpu.memory_space<vmem>>, vector<1x16x2xf32>
    %32 = vector.shape_cast %31 : vector<1x16x2xf32> to vector<16x2xf32>
    %c0_18 = arith.constant 0 : index
    %c10 = arith.constant 10 : index
    %33 = vector.load %arg5[%c0_18, %c10] : memref<16x64xf32, #tpu.memory_space<vmem>>, vector<16x2xf32>
    tpu.vector_store %arg5[%c0_18, %c10], %32 {strides = array<i32>} : memref<16x64xf32, #tpu.memory_space<vmem>>, vector<16x2xf32>,
    %c6_i32 = arith.constant 6 : i32
    %34 = arith.addi %1, %c6_i32 : i32
    %c0_19 = arith.constant 0 : index
    %35 = arith.index_cast %34 : i32 to index
    %c0_20 = arith.constant 0 : index
    %36 = vector.load %arg2[%c0_19, %35, %c0_20] : memref<1x46x2xf32, #tpu.memory_space<vmem>>, vector<1x16x2xf32>
    %37 = vector.shape_cast %36 : vector<1x16x2xf32> to vector<16x2xf32>
    %c0_21 = arith.constant 0 : index
    %c12 = arith.constant 12 : index
    %38 = vector.load %arg5[%c0_21, %c12] : memref<16x64xf32, #tpu.memory_space<vmem>>, vector<16x2xf32>
    tpu.vector_store %arg5[%c0_21, %c12], %37 {strides = array<i32>} : memref<16x64xf32, #tpu.memory_space<vmem>>, vector<16x2xf32>,
    %c7_i32 = arith.constant 7 : i32
    %39 = arith.addi %1, %c7_i32 : i32
    %c0_22 = arith.constant 0 : index
    %40 = arith.index_cast %39 : i32 to index
    %c0_23 = arith.constant 0 : index
    %41 = vector.load %arg2[%c0_22, %40, %c0_23] : memref<1x46x2xf32, #tpu.memory_space<vmem>>, vector<1x16x2xf32>
    %42 = vector.shape_cast %41 : vector<1x16x2xf32> to vector<16x2xf32>
    %c0_24 = arith.constant 0 : index
    %c14 = arith.constant 14 : index
    %43 = vector.load %arg5[%c0_24, %c14] : memref<16x64xf32, #tpu.memory_space<vmem>>, vector<16x2xf32>
    tpu.vector_store %arg5[%c0_24, %c14], %42 {strides = array<i32>} : memref<16x64xf32, #tpu.memory_space<vmem>>, vector<16x2xf32>,
    %c8_i32 = arith.constant 8 : i32
    %44 = arith.addi %1, %c8_i32 : i32
    %c0_25 = arith.constant 0 : index
    %45 = arith.index_cast %44 : i32 to index
    %c0_26 = arith.constant 0 : index
    %46 = vector.load %arg2[%c0_25, %45, %c0_26] : memref<1x46x2xf32, #tpu.memory_space<vmem>>, vector<1x16x2xf32>
    %47 = vector.shape_cast %46 : vector<1x16x2xf32> to vector<16x2xf32>
    %c0_27 = arith.constant 0 : index
    %c16 = arith.constant 16 : index
    %48 = vector.load %arg5[%c0_27, %c16] : memref<16x64xf32, #tpu.memory_space<vmem>>, vector<16x2xf32>
    tpu.vector_store %arg5[%c0_27, %c16], %47 {strides = array<i32>} : memref<16x64xf32, #tpu.memory_space<vmem>>, vector<16x2xf32>,
    %c9_i32 = arith.constant 9 : i32
    %49 = arith.addi %1, %c9_i32 : i32
    %c0_28 = arith.constant 0 : index
    %50 = arith.index_cast %49 : i32 to index
    %c0_29 = arith.constant 0 : index
    %51 = vector.load %arg2[%c0_28, %50, %c0_29] : memref<1x46x2xf32, #tpu.memory_space<vmem>>, vector<1x16x2xf32>
    %52 = vector.shape_cast %51 : vector<1x16x2xf32> to vector<16x2xf32>
    %c0_30 = arith.constant 0 : index
    %c18 = arith.constant 18 : index
    %53 = vector.load %arg5[%c0_30, %c18] : memref<16x64xf32, #tpu.memory_space<vmem>>, vector<16x2xf32>
    tpu.vector_store %arg5[%c0_30, %c18], %52 {strides = array<i32>} : memref<16x64xf32, #tpu.memory_space<vmem>>, vector<16x2xf32>,
    %c10_i32 = arith.constant 10 : i32
    %54 = arith.addi %1, %c10_i32 : i32
    %c0_31 = arith.constant 0 : index
    %55 = arith.index_cast %54 : i32 to index
    %c0_32 = arith.constant 0 : index
    %56 = vector.load %arg2[%c0_31, %55, %c0_32] : memref<1x46x2xf32, #tpu.memory_space<vmem>>, vector<1x16x2xf32>
    %57 = vector.shape_cast %56 : vector<1x16x2xf32> to vector<16x2xf32>
    %c0_33 = arith.constant 0 : index
    %c20 = arith.constant 20 : index
    %58 = vector.load %arg5[%c0_33, %c20] : memref<16x64xf32, #tpu.memory_space<vmem>>, vector<16x2xf32>
    tpu.vector_store %arg5[%c0_33, %c20], %57 {strides = array<i32>} : memref<16x64xf32, #tpu.memory_space<vmem>>, vector<16x2xf32>,
    %c11_i32 = arith.constant 11 : i32
    %59 = arith.addi %1, %c11_i32 : i32
    %c0_34 = arith.constant 0 : index
    %60 = arith.index_cast %59 : i32 to index
    %c0_35 = arith.constant 0 : index
    %61 = vector.load %arg2[%c0_34, %60, %c0_35] : memref<1x46x2xf32, #tpu.memory_space<vmem>>, vector<1x16x2xf32>
    %62 = vector.shape_cast %61 : vector<1x16x2xf32> to vector<16x2xf32>
    %c0_36 = arith.constant 0 : index
    %c22 = arith.constant 22 : index
    %63 = vector.load %arg5[%c0_36, %c22] : memref<16x64xf32, #tpu.memory_space<vmem>>, vector<16x2xf32>
    tpu.vector_store %arg5[%c0_36, %c22], %62 {strides = array<i32>} : memref<16x64xf32, #tpu.memory_space<vmem>>, vector<16x2xf32>,
    %c12_i32 = arith.constant 12 : i32
    %64 = arith.addi %1, %c12_i32 : i32
    %c0_37 = arith.constant 0 : index
    %65 = arith.index_cast %64 : i32 to index
    %c0_38 = arith.constant 0 : index
    %66 = vector.load %arg2[%c0_37, %65, %c0_38] : memref<1x46x2xf32, #tpu.memory_space<vmem>>, vector<1x16x2xf32>
    %67 = vector.shape_cast %66 : vector<1x16x2xf32> to vector<16x2xf32>
    %c0_39 = arith.constant 0 : index
    %c24 = arith.constant 24 : index
    %68 = vector.load %arg5[%c0_39, %c24] : memref<16x64xf32, #tpu.memory_space<vmem>>, vector<16x2xf32>
    tpu.vector_store %arg5[%c0_39, %c24], %67 {strides = array<i32>} : memref<16x64xf32, #tpu.memory_space<vmem>>, vector<16x2xf32>,
    %c13_i32 = arith.constant 13 : i32
    %69 = arith.addi %1, %c13_i32 : i32
    %c0_40 = arith.constant 0 : index
    %70 = arith.index_cast %69 : i32 to index
    %c0_41 = arith.constant 0 : index
    %71 = vector.load %arg2[%c0_40, %70, %c0_41] : memref<1x46x2xf32, #tpu.memory_space<vmem>>, vector<1x16x2xf32>
    %72 = vector.shape_cast %71 : vector<1x16x2xf32> to vector<16x2xf32>
    %c0_42 = arith.constant 0 : index
    %c26 = arith.constant 26 : index
    %73 = vector.load %arg5[%c0_42, %c26] : memref<16x64xf32, #tpu.memory_space<vmem>>, vector<16x2xf32>
    tpu.vector_store %arg5[%c0_42, %c26], %72 {strides = array<i32>} : memref<16x64xf32, #tpu.memory_space<vmem>>, vector<16x2xf32>,
    %c14_i32 = arith.constant 14 : i32
    %74 = arith.addi %1, %c14_i32 : i32
    %c0_43 = arith.constant 0 : index
    %75 = arith.index_cast %74 : i32 to index
    %c0_44 = arith.constant 0 : index
    %76 = vector.load %arg2[%c0_43, %75, %c0_44] : memref<1x46x2xf32, #tpu.memory_space<vmem>>, vector<1x16x2xf32>
    %77 = vector.shape_cast %76 : vector<1x16x2xf32> to vector<16x2xf32>
    %c0_45 = arith.constant 0 : index
    %c28 = arith.constant 28 : index
    %78 = vector.load %arg5[%c0_45, %c28] : memref<16x64xf32, #tpu.memory_space<vmem>>, vector<16x2xf32>
    tpu.vector_store %arg5[%c0_45, %c28], %77 {strides = array<i32>} : memref<16x64xf32, #tpu.memory_space<vmem>>, vector<16x2xf32>,
    %c15_i32 = arith.constant 15 : i32
    %79 = arith.addi %1, %c15_i32 : i32
    %c0_46 = arith.constant 0 : index
    %80 = arith.index_cast %79 : i32 to index
    %c0_47 = arith.constant 0 : index
    %81 = vector.load %arg2[%c0_46, %80, %c0_47] : memref<1x46x2xf32, #tpu.memory_space<vmem>>, vector<1x16x2xf32>
    %82 = vector.shape_cast %81 : vector<1x16x2xf32> to vector<16x2xf32>
    %c0_48 = arith.constant 0 : index
    %c30 = arith.constant 30 : index
    %83 = vector.load %arg5[%c0_48, %c30] : memref<16x64xf32, #tpu.memory_space<vmem>>, vector<16x2xf32>
    tpu.vector_store %arg5[%c0_48, %c30], %82 {strides = array<i32>} : memref<16x64xf32, #tpu.memory_space<vmem>>, vector<16x2xf32>,
    %c16_i32_49 = arith.constant 16 : i32
    %84 = arith.addi %1, %c16_i32_49 : i32
    %c0_50 = arith.constant 0 : index
    %85 = arith.index_cast %84 : i32 to index
    %c0_51 = arith.constant 0 : index
    %86 = vector.load %arg2[%c0_50, %85, %c0_51] : memref<1x46x2xf32, #tpu.memory_space<vmem>>, vector<1x16x2xf32>
    %87 = vector.shape_cast %86 : vector<1x16x2xf32> to vector<16x2xf32>
    %c0_52 = arith.constant 0 : index
    %c32 = arith.constant 32 : index
    %88 = vector.load %arg5[%c0_52, %c32] : memref<16x64xf32, #tpu.memory_space<vmem>>, vector<16x2xf32>
    tpu.vector_store %arg5[%c0_52, %c32], %87 {strides = array<i32>} : memref<16x64xf32, #tpu.memory_space<vmem>>, vector<16x2xf32>,
    %c17_i32 = arith.constant 17 : i32
    %89 = arith.addi %1, %c17_i32 : i32
    %c0_53 = arith.constant 0 : index
    %90 = arith.index_cast %89 : i32 to index
    %c0_54 = arith.constant 0 : index
    %91 = vector.load %arg2[%c0_53, %90, %c0_54] : memref<1x46x2xf32, #tpu.memory_space<vmem>>, vector<1x16x2xf32>
    %92 = vector.shape_cast %91 : vector<1x16x2xf32> to vector<16x2xf32>
    %c0_55 = arith.constant 0 : index
    %c34 = arith.constant 34 : index
    %93 = vector.load %arg5[%c0_55, %c34] : memref<16x64xf32, #tpu.memory_space<vmem>>, vector<16x2xf32>
    tpu.vector_store %arg5[%c0_55, %c34], %92 {strides = array<i32>} : memref<16x64xf32, #tpu.memory_space<vmem>>, vector<16x2xf32>,
    %c18_i32 = arith.constant 18 : i32
    %94 = arith.addi %1, %c18_i32 : i32
    %c0_56 = arith.constant 0 : index
    %95 = arith.index_cast %94 : i32 to index
    %c0_57 = arith.constant 0 : index
    %96 = vector.load %arg2[%c0_56, %95, %c0_57] : memref<1x46x2xf32, #tpu.memory_space<vmem>>, vector<1x16x2xf32>
    %97 = vector.shape_cast %96 : vector<1x16x2xf32> to vector<16x2xf32>
    %c0_58 = arith.constant 0 : index
    %c36 = arith.constant 36 : index
    %98 = vector.load %arg5[%c0_58, %c36] : memref<16x64xf32, #tpu.memory_space<vmem>>, vector<16x2xf32>
    tpu.vector_store %arg5[%c0_58, %c36], %97 {strides = array<i32>} : memref<16x64xf32, #tpu.memory_space<vmem>>, vector<16x2xf32>,
    %c19_i32 = arith.constant 19 : i32
    %99 = arith.addi %1, %c19_i32 : i32
    %c0_59 = arith.constant 0 : index
    %100 = arith.index_cast %99 : i32 to index
    %c0_60 = arith.constant 0 : index
    %101 = vector.load %arg2[%c0_59, %100, %c0_60] : memref<1x46x2xf32, #tpu.memory_space<vmem>>, vector<1x16x2xf32>
    %102 = vector.shape_cast %101 : vector<1x16x2xf32> to vector<16x2xf32>
    %c0_61 = arith.constant 0 : index
    %c38 = arith.constant 38 : index
    %103 = vector.load %arg5[%c0_61, %c38] : memref<16x64xf32, #tpu.memory_space<vmem>>, vector<16x2xf32>
    tpu.vector_store %arg5[%c0_61, %c38], %102 {strides = array<i32>} : memref<16x64xf32, #tpu.memory_space<vmem>>, vector<16x2xf32>,
    %c20_i32 = arith.constant 20 : i32
    %104 = arith.addi %1, %c20_i32 : i32
    %c0_62 = arith.constant 0 : index
    %105 = arith.index_cast %104 : i32 to index
    %c0_63 = arith.constant 0 : index
    %106 = vector.load %arg2[%c0_62, %105, %c0_63] : memref<1x46x2xf32, #tpu.memory_space<vmem>>, vector<1x16x2xf32>
    %107 = vector.shape_cast %106 : vector<1x16x2xf32> to vector<16x2xf32>
    %c0_64 = arith.constant 0 : index
    %c40 = arith.constant 40 : index
    %108 = vector.load %arg5[%c0_64, %c40] : memref<16x64xf32, #tpu.memory_space<vmem>>, vector<16x2xf32>
    tpu.vector_store %arg5[%c0_64, %c40], %107 {strides = array<i32>} : memref<16x64xf32, #tpu.memory_space<vmem>>, vector<16x2xf32>,
    %c21_i32 = arith.constant 21 : i32
    %109 = arith.addi %1, %c21_i32 : i32
    %c0_65 = arith.constant 0 : index
    %110 = arith.index_cast %109 : i32 to index
    %c0_66 = arith.constant 0 : index
    %111 = vector.load %arg2[%c0_65, %110, %c0_66] : memref<1x46x2xf32, #tpu.memory_space<vmem>>, vector<1x16x2xf32>
    %112 = vector.shape_cast %111 : vector<1x16x2xf32> to vector<16x2xf32>
    %c0_67 = arith.constant 0 : index
    %c42 = arith.constant 42 : index
    %113 = vector.load %arg5[%c0_67, %c42] : memref<16x64xf32, #tpu.memory_space<vmem>>, vector<16x2xf32>
    tpu.vector_store %arg5[%c0_67, %c42], %112 {strides = array<i32>} : memref<16x64xf32, #tpu.memory_space<vmem>>, vector<16x2xf32>,
    %c22_i32 = arith.constant 22 : i32
    %114 = arith.addi %1, %c22_i32 : i32
    %c0_68 = arith.constant 0 : index
    %115 = arith.index_cast %114 : i32 to index
    %c0_69 = arith.constant 0 : index
    %116 = vector.load %arg2[%c0_68, %115, %c0_69] : memref<1x46x2xf32, #tpu.memory_space<vmem>>, vector<1x16x2xf32>
    %117 = vector.shape_cast %116 : vector<1x16x2xf32> to vector<16x2xf32>
    %c0_70 = arith.constant 0 : index
    %c44 = arith.constant 44 : index
    %118 = vector.load %arg5[%c0_70, %c44] : memref<16x64xf32, #tpu.memory_space<vmem>>, vector<16x2xf32>
    tpu.vector_store %arg5[%c0_70, %c44], %117 {strides = array<i32>} : memref<16x64xf32, #tpu.memory_space<vmem>>, vector<16x2xf32>,
    %c23_i32 = arith.constant 23 : i32
    %119 = arith.addi %1, %c23_i32 : i32
    %c0_71 = arith.constant 0 : index
    %120 = arith.index_cast %119 : i32 to index
    %c0_72 = arith.constant 0 : index
    %121 = vector.load %arg2[%c0_71, %120, %c0_72] : memref<1x46x2xf32, #tpu.memory_space<vmem>>, vector<1x16x2xf32>
    %122 = vector.shape_cast %121 : vector<1x16x2xf32> to vector<16x2xf32>
    %c0_73 = arith.constant 0 : index
    %c46 = arith.constant 46 : index
    %123 = vector.load %arg5[%c0_73, %c46] : memref<16x64xf32, #tpu.memory_space<vmem>>, vector<16x2xf32>
    tpu.vector_store %arg5[%c0_73, %c46], %122 {strides = array<i32>} : memref<16x64xf32, #tpu.memory_space<vmem>>, vector<16x2xf32>,
    %c24_i32 = arith.constant 24 : i32
    %124 = arith.addi %1, %c24_i32 : i32
    %c0_74 = arith.constant 0 : index
    %125 = arith.index_cast %124 : i32 to index
    %c0_75 = arith.constant 0 : index
    %126 = vector.load %arg2[%c0_74, %125, %c0_75] : memref<1x46x2xf32, #tpu.memory_space<vmem>>, vector<1x16x2xf32>
    %127 = vector.shape_cast %126 : vector<1x16x2xf32> to vector<16x2xf32>
    %c0_76 = arith.constant 0 : index
    %c48 = arith.constant 48 : index
    %128 = vector.load %arg5[%c0_76, %c48] : memref<16x64xf32, #tpu.memory_space<vmem>>, vector<16x2xf32>
    tpu.vector_store %arg5[%c0_76, %c48], %127 {strides = array<i32>} : memref<16x64xf32, #tpu.memory_space<vmem>>, vector<16x2xf32>,
    %c25_i32 = arith.constant 25 : i32
    %129 = arith.addi %1, %c25_i32 : i32
    %c0_77 = arith.constant 0 : index
    %130 = arith.index_cast %129 : i32 to index
    %c0_78 = arith.constant 0 : index
    %131 = vector.load %arg2[%c0_77, %130, %c0_78] : memref<1x46x2xf32, #tpu.memory_space<vmem>>, vector<1x16x2xf32>
    %132 = vector.shape_cast %131 : vector<1x16x2xf32> to vector<16x2xf32>
    %c0_79 = arith.constant 0 : index
    %c50 = arith.constant 50 : index
    %133 = vector.load %arg5[%c0_79, %c50] : memref<16x64xf32, #tpu.memory_space<vmem>>, vector<16x2xf32>
    tpu.vector_store %arg5[%c0_79, %c50], %132 {strides = array<i32>} : memref<16x64xf32, #tpu.memory_space<vmem>>, vector<16x2xf32>,
    %c26_i32 = arith.constant 26 : i32
    %134 = arith.addi %1, %c26_i32 : i32
    %c0_80 = arith.constant 0 : index
    %135 = arith.index_cast %134 : i32 to index
    %c0_81 = arith.constant 0 : index
    %136 = vector.load %arg2[%c0_80, %135, %c0_81] : memref<1x46x2xf32, #tpu.memory_space<vmem>>, vector<1x16x2xf32>
    %137 = vector.shape_cast %136 : vector<1x16x2xf32> to vector<16x2xf32>
    %c0_82 = arith.constant 0 : index
    %c52 = arith.constant 52 : index
    %138 = vector.load %arg5[%c0_82, %c52] : memref<16x64xf32, #tpu.memory_space<vmem>>, vector<16x2xf32>
    tpu.vector_store %arg5[%c0_82, %c52], %137 {strides = array<i32>} : memref<16x64xf32, #tpu.memory_space<vmem>>, vector<16x2xf32>,
    %c27_i32 = arith.constant 27 : i32
    %139 = arith.addi %1, %c27_i32 : i32
    %c0_83 = arith.constant 0 : index
    %140 = arith.index_cast %139 : i32 to index
    %c0_84 = arith.constant 0 : index
    %141 = vector.load %arg2[%c0_83, %140, %c0_84] : memref<1x46x2xf32, #tpu.memory_space<vmem>>, vector<1x16x2xf32>
    %142 = vector.shape_cast %141 : vector<1x16x2xf32> to vector<16x2xf32>
    %c0_85 = arith.constant 0 : index
    %c54 = arith.constant 54 : index
    %143 = vector.load %arg5[%c0_85, %c54] : memref<16x64xf32, #tpu.memory_space<vmem>>, vector<16x2xf32>
    tpu.vector_store %arg5[%c0_85, %c54], %142 {strides = array<i32>} : memref<16x64xf32, #tpu.memory_space<vmem>>, vector<16x2xf32>,
    %c28_i32 = arith.constant 28 : i32
    %144 = arith.addi %1, %c28_i32 : i32
    %c0_86 = arith.constant 0 : index
    %145 = arith.index_cast %144 : i32 to index
    %c0_87 = arith.constant 0 : index
    %146 = vector.load %arg2[%c0_86, %145, %c0_87] : memref<1x46x2xf32, #tpu.memory_space<vmem>>, vector<1x16x2xf32>
    %147 = vector.shape_cast %146 : vector<1x16x2xf32> to vector<16x2xf32>
    %c0_88 = arith.constant 0 : index
    %c56 = arith.constant 56 : index
    %148 = vector.load %arg5[%c0_88, %c56] : memref<16x64xf32, #tpu.memory_space<vmem>>, vector<16x2xf32>
    tpu.vector_store %arg5[%c0_88, %c56], %147 {strides = array<i32>} : memref<16x64xf32, #tpu.memory_space<vmem>>, vector<16x2xf32>,
    %c29_i32 = arith.constant 29 : i32
    %149 = arith.addi %1, %c29_i32 : i32
    %c0_89 = arith.constant 0 : index
    %150 = arith.index_cast %149 : i32 to index
    %c0_90 = arith.constant 0 : index
    %151 = vector.load %arg2[%c0_89, %150, %c0_90] : memref<1x46x2xf32, #tpu.memory_space<vmem>>, vector<1x16x2xf32>
    %152 = vector.shape_cast %151 : vector<1x16x2xf32> to vector<16x2xf32>
    %c0_91 = arith.constant 0 : index
    %c58 = arith.constant 58 : index
    %153 = vector.load %arg5[%c0_91, %c58] : memref<16x64xf32, #tpu.memory_space<vmem>>, vector<16x2xf32>
    tpu.vector_store %arg5[%c0_91, %c58], %152 {strides = array<i32>} : memref<16x64xf32, #tpu.memory_space<vmem>>, vector<16x2xf32>,
    %c30_i32 = arith.constant 30 : i32
    %154 = arith.addi %1, %c30_i32 : i32
    %c0_92 = arith.constant 0 : index
    %155 = arith.index_cast %154 : i32 to index
    %c0_93 = arith.constant 0 : index
    %156 = vector.load %arg2[%c0_92, %155, %c0_93] : memref<1x46x2xf32, #tpu.memory_space<vmem>>, vector<1x16x2xf32>
    %157 = vector.shape_cast %156 : vector<1x16x2xf32> to vector<16x2xf32>
    %c0_94 = arith.constant 0 : index
    %c60 = arith.constant 60 : index
    %158 = vector.load %arg5[%c0_94, %c60] : memref<16x64xf32, #tpu.memory_space<vmem>>, vector<16x2xf32>
    tpu.vector_store %arg5[%c0_94, %c60], %157 {strides = array<i32>} : memref<16x64xf32, #tpu.memory_space<vmem>>, vector<16x2xf32>,
    %c0_95 = arith.constant 0 : index
    %c0_96 = arith.constant 0 : index
    %159 = vector.load %arg5[%c0_95, %c0_96] : memref<16x64xf32, #tpu.memory_space<vmem>>, vector<16x64xf32>
    %c0_97 = arith.constant 0 : index
    %c0_98 = arith.constant 0 : index
    %160 = vector.load %arg3[%c0_97, %c0_98] : memref<64x32xf32, #tpu.memory_space<vmem>>, vector<64x32xf32>
    %cst_99 = arith.constant dense<0.000000e+00> : vector<16x32xf32>
    %161 = tpu.matmul %159, %160, %cst_99 {dimension_numbers = #tpu.dot_dimension_numbers<[1], [0], [0], [1], [0, 0, 1, 1], [], []>} : vector<16x64xf32>, vector<64x32xf32>, vector<16x32xf32> -> vector<16x32xf32>
    %c0_100 = arith.constant 0 : index
    %c0_101 = arith.constant 0 : index
    %c0_102 = arith.constant 0 : index
    %162 = vector.load %arg4[%c0_100, %c0_101, %c0_102] : memref<1x16x32xf32, #tpu.memory_space<vmem>>, vector<1x16x32xf32>
    %163 = vector.shape_cast %162 : vector<1x16x32xf32> to vector<16x32xf32>
    %164 = vector.shape_cast %161 : vector<16x32xf32> to vector<1x16x32xf32>
    tpu.vector_store %arg4[%c0_100, %c0_101, %c0_102], %164 {strides = array<i32>} : memref<1x16x32xf32, #tpu.memory_space<vmem>>, vector<1x16x32xf32>,
    return
  }
  func.func @transform_0(%arg0: i32, %arg1: i32) -> (i32, i32, i32) {
    %c0_i32 = arith.constant 0 : i32
    %c0_i32_0 = arith.constant 0 : i32
    %c0_i32_1 = arith.constant 0 : i32
    return %arg0, %c0_i32, %c0_i32_0 : i32, i32, i32
  }
  func.func @transform_1(%arg0: i32, %arg1: i32) -> (i32, i32) {
    %c0_i32 = arith.constant 0 : i32
    %c0_i32_0 = arith.constant 0 : i32
    %c0_i32_1 = arith.constant 0 : i32
    return %c0_i32, %c0_i32_0 : i32, i32
  }
  func.func @transform_2(%arg0: i32, %arg1: i32) -> (i32, i32, i32) {
    %c0_i32 = arith.constant 0 : i32
    %c0_i32_0 = arith.constant 0 : i32
    return %arg0, %arg1, %c0_i32 : i32, i32, i32
  }
}

</mosaic_0001>

<llo_original>
// kernel: location_layer_forward.1
$region0: #{location_layer_forward.1}
  #allocation0 [shape = 'u32[]', space=smem, size = 0x4, offset = 0x4, fixed_abs, tag = 'smem constant byte address 0x4 - core index']
  #allocation1 [shape = 'u32[72,128]{1,0:T(1,128)}', space=vmem, size = 0x9000, scoped, tag = 'internal scratch']
  #allocation2 [shape = 'f32[16,64]{1,0:T(8,128)}', space=vmem, size = 0x2000, scoped, tag = 'scratch operand']
  %s0 = inlined_call_operand.vmem [shape: f32[2,46,2], index: 0, kind: input, shape index: {}]
  %s1 = inlined_call_operand.vmem [shape: f32[64,32], index: 1, kind: input, shape index: {}]
  %s2 = inlined_call_operand.hbm [shape: f32[2,16,32], index: 2, kind: output, shape index: {}]
  %s3 = sld [smem:[#allocation0]]
  $region41: #{location_layer_forward.1} parent=0
    _
  %s5 = ssub.s32 1, %s3
  %s6 = scalar_select 0, %s5, %s3
  $region1: #{location_layer_forward.1} parent=0
    #allocation3 [shape = 'u8[16384]{0}', space=vmem, size = 0x4000, scoped, tag = 'output window, operand 0']
    #allocation4 [shape = 's32[2]{0}', space=sflag, size = 0x8, scoped, tag = 'scoped memory for location_layer_forward.1']
    %7 = vsyncpa [#allocation4], 0
    %s8 = scalar_lea.sflag [#allocation4], 1
    %9 = vsyncpa %s8, 0
    loop: start=0, step=1, limit=4
    $region2: #{location_layer_forward.1} parent=1 // loop_pre_header
      _
    $region3: #{location_layer_forward.1} parent=1 // loop_header
      %s11 = sphi 0, %s15
      %p12 = scmp.ge.s32.totalorder %s11, 4
      %s18 = sphi 0, %s30
      %s19 = sphi 0, %s26
      %s20 = sphi 0, %s18
      %s21 = sphi 0, %s19
      %s22 = sphi 0, %s20
      %s23 = sphi 0, %s21
      %s33 = sphi 0, %s35
      %s36 = sphi 0, %s33
      %s37 = sphi 0, %s36
      %s53 = sphi 0, %s37
      %s57 = sphi 0, %s57
      %s59 = sphi 0, %s57
      %s60 = sphi 0, %s59
      %s74 = sphi 0, %s60
      %s82 = sphi 0, %s84
      %s85 = sphi 0, %s82
      %s86 = sphi 0, %s85
      %s102 = sphi 0, %s86
    $region4: #{location_layer_forward.1} parent=1 // loop_header_branch
      %14 = sbr.rel (%p12) target = $region8
    $region5: #{location_layer_forward.1} parent=1 // loop_body
      %s16 = ssub.s32 %s11, 1
      %s17 = ssub.s32 %s11, 2
      %s24 = sadd.s32 1, %s19
      %p25 = scmp.ge.s32.totalorder %s24, 1
      %s26 = scalar_select %p25, 0, %s24
      %s27 = sadd.s32 1, %s18
      %s28 = scalar_select %p25, %s27, %s18
      %p29 = scmp.ge.s32.totalorder %s28, 2
      %s30 = scalar_select %p29, 0, %s28
      %s31 = ssub.s32 %s18, %s30
      %p32 = scmp.eq.s32.totalorder %s31, 0
      %s34 = sadd.s32 %s33, 1
      %s35 = scalar_select %p32, %s33, %s34
      %p38 = pneg %p32
      %p39 = scmp.eq.s32.totalorder %s11, 1
      %p40 = por %p38, %p39
      %p41 = scmp.ne.s32.totalorder %s33, %s36
      %p42 = scmp.eq.s32.totalorder %s11, 0
      %p43 = por %p41, %p42
      %p44 = scmp.ne.s32.totalorder %s33, %s36
      %p45 = scmp.eq.s32.totalorder %s16, 1
      %p46 = por %p44, %p45
      %p47 = scmp.ne.s32.totalorder %s36, %s37
      %p48 = scmp.eq.s32.totalorder %s16, 0
      %p49 = por %p47, %p48
      %p50 = scmp.ne.s32.totalorder %s36, %s37
      %p51 = scmp.eq.s32.totalorder %s17, 1
      %p52 = por %p50, %p51
      %p54 = scmp.ne.s32.totalorder %s37, %s53
      %p55 = scmp.eq.s32.totalorder %s17, 0
      %p56 = por %p54, %p55
      %s58 = sadd.s32 %s57, 1
      %p61 = scmp.eq.s32.totalorder %s11, 1
      %p62 = scmp.ne.s32.totalorder %s57, %s59
      %p63 = scmp.eq.s32.totalorder %s11, 0
      %p64 = por %p62, %p63
      %p65 = scmp.ne.s32.totalorder %s57, %s59
      %p66 = scmp.eq.s32.totalorder %s16, 1
      %p67 = por %p65, %p66
      %p68 = scmp.ne.s32.totalorder %s59, %s60
      %p69 = scmp.eq.s32.totalorder %s16, 0
      %p70 = por %p68, %p69
      %p71 = scmp.ne.s32.totalorder %s59, %s60
      %p72 = scmp.eq.s32.totalorder %s17, 1
      %p73 = por %p71, %p72
      %p75 = scmp.ne.s32.totalorder %s60, %s74
      %p76 = scmp.eq.s32.totalorder %s17, 0
      %p77 = por %p75, %p76
      %s78 = ssub.s32 %s18, %s30
      %s79 = ssub.s32 %s19, %s26
      %s80 = sor.u32 %s78, %s79
      %p81 = scmp.eq.s32.totalorder %s80, 0
      %s83 = sadd.s32 %s82, 1
      %s84 = scalar_select %p81, %s82, %s83
      %p87 = pneg %p81
      %p88 = scmp.eq.s32.totalorder %s11, 1
      %p89 = por %p87, %p88
      %p90 = scmp.ne.s32.totalorder %s82, %s85
      %p91 = scmp.eq.s32.totalorder %s11, 0
      %p92 = por %p90, %p91
      %p93 = scmp.ne.s32.totalorder %s82, %s85
      %p94 = scmp.eq.s32.totalorder %s16, 1
      %p95 = por %p93, %p94
      %p96 = scmp.ne.s32.totalorder %s85, %s86
      %p97 = scmp.eq.s32.totalorder %s16, 0
      %p98 = por %p96, %p97
      %p99 = scmp.ne.s32.totalorder %s85, %s86
      %p100 = scmp.eq.s32.totalorder %s17, 1
      %p101 = por %p99, %p100
      %p103 = scmp.ne.s32.totalorder %s86, %s102
      %p104 = scmp.eq.s32.totalorder %s17, 0
      %p105 = por %p103, %p104
      %p106 = scmp.le.s32.totalorder 1, %s11
      %p107 = scmp.lt.s32.totalorder %s11, 3
      %p108 = pnand %p106, %p107
      %p109 = pneg %p108
      // Predicated region
      $region9: #{location_layer_forward.1} parent=5 // pred_check
        _
      $region10: #{location_layer_forward.1} parent=5 // pred_check_branch
        %111 = sbr.rel (%p108) target = $region12
      $region11: #{location_layer_forward.1} parent=5 // pred_region
        %s112 = ssub.s32 %s11, 1
        // Predicated region
        $region13: #{location_layer_forward.1} parent=11 // pred_check
          %p113 = pneg %p70
        $region14: #{location_layer_forward.1} parent=11 // pred_check_branch
          %115 = sbr.rel (%p113) target = $region16
        $region15: #{location_layer_forward.1} parent=11 // pred_region
          _
        $region16: #{location_layer_forward.1} parent=11 // pred_fallthru
          _
      $region12: #{location_layer_forward.1} parent=5 // pred_fallthru
        _
      %p116 = scmp.lt.s32.totalorder %s11, 2
      // Predicated region
      $region17: #{location_layer_forward.1} parent=5 // pred_check
        %p117 = pneg %p116
      $region18: #{location_layer_forward.1} parent=5 // pred_check_branch
        %119 = sbr.rel (%p117) target = $region20
      $region19: #{location_layer_forward.1} parent=5 // pred_region
        // Predicated region
        $region21: #{location_layer_forward.1} parent=19 // pred_check
          %p120 = pneg %p43
        $region22: #{location_layer_forward.1} parent=19 // pred_check_branch
          %122 = sbr.rel (%p120) target = $region24
        $region23: #{location_layer_forward.1} parent=19 // pred_region
          %p123 = scmp.lt.s32.totalorder %s18, 1
          %s124 = scalar_select %p123, %s18, 1
          %s125 = smul.addr %s124, 6
          %s126 = smul.addr %s125, 8
          %s127 = scalar_lea.vmem %s0, %s126
        $region24: #{location_layer_forward.1} parent=19 // pred_fallthru
          _
      $region20: #{location_layer_forward.1} parent=5 // pred_fallthru
        _
      %p128 = scmp.le.s32.totalorder 1, %s11
      %p129 = scmp.lt.s32.totalorder %s11, 3
      %p130 = pnand %p128, %p129
      %p131 = pneg %p130
      // Predicated region
      $region25: #{location_layer_forward.1} parent=5 // pred_check
        _
      $region26: #{location_layer_forward.1} parent=5 // pred_check_branch
        %133 = sbr.rel (%p130) target = $region28
      $region27: #{location_layer_forward.1} parent=5 // pred_region
        %s134 = ssub.s32 %s11, 1
        %p135 = scmp.lt.s32.totalorder %s20, 1
        %s136 = scalar_select %p135, %s20, 1
        %s137 = smul.addr %s136, 6
        %s138 = smul.addr %s137, 8
        %s139 = scalar_lea.vmem %s0, %s138
        %p140 = pneg %p49
        %p141 = pneg %p46
        %p142 = pneg %p70
        %p143 = pneg %p67
        %p144 = pneg %p98
        %p145 = pneg %p95
        %s146 = sand.u32 %s85, 1
        %s147 = scalar_lea.sflag [#allocation4], %s146
        %s148 = sand.u32 %s85, 1
        %s149 = smul.addr %s148, 16
        %s150 = scalar_lea.vmem [#allocation3], %s149
        %p151 = scmp.lt.s32.totalorder %s20, 1
        %s152 = scalar_select %p151, %s20, 1
        %s153 = smul.addr %s152, 6
        %s154 = smul.addr %s153, 8
        %s155 = scalar_lea.vmem %s0, %s154
        %s156 = smul.u32 2, %s21
        %s157 = smul.u32 %s21, 16
        %vm158 = vcmask 523760
        %159 = vst.msk [vmem:[#allocation2] sm:$0xff] %vm158, 0.0
        %160 = vst.msk [vmem:[#allocation2 + $0x8] sm:$0xff] %vm158, 0.0
        %s161 = scalar_lea.vmem %s155, %s157
        %v162 = vld [vmem:[%s161] sm:$0xff]
        %v163 = vld [vmem:[%s161 + $0x8] sm:$0xff]
        %vm164 = vcmask 15360
        %165 = vst.msk [vmem:[#allocation2] sm:$0xff] %vm164, %v162
        %166 = vst.msk [vmem:[#allocation2 + $0x8] sm:$0xff] %vm164, %v163
        %s167 = sadd.s32 %s157, 1
        %s168 = scalar_lea.vmem %s155, %s167
        %v169 = vld [vmem:[%s168] sm:$0xff]
        %v170 = vld [vmem:[%s168 + $0x8] sm:$0xff]
        %173 = vrot.lane.b32.xlu0 %v169, 2
        %v174 = vpop.permute.xlu0 %173
        %175 = vrot.lane.b32.xlu0 %v170, 2
        %v176 = vpop.permute.xlu0 %175
        %vm179 = vcmask 31760
        %180 = vst.msk [vmem:[#allocation2] sm:$0xff] %vm179, %v174
        %181 = vst.msk [vmem:[#allocation2 + $0x8] sm:$0xff] %vm179, %v176
        %s182 = sadd.s32 %s157, 2
        %s183 = scalar_lea.vmem %s155, %s182
        %v184 = vld [vmem:[%s183] sm:$0xff]
        %v185 = vld [vmem:[%s183 + $0x8] sm:$0xff]
        %188 = vrot.lane.b32.xlu0 %v184, 4
        %v189 = vpop.permute.xlu0 %188
        %190 = vrot.lane.b32.xlu0 %v185, 4
        %v191 = vpop.permute.xlu0 %190
        %vm194 = vcmask 48160
        %195 = vst.msk [vmem:[#allocation2] sm:$0xff] %vm194, %v189
        %196 = vst.msk [vmem:[#allocation2 + $0x8] sm:$0xff] %vm194, %v191
        %s197 = sadd.s32 %s157, 3
        %s198 = scalar_lea.vmem %s155, %s197
        %v199 = vld [vmem:[%s198] sm:$0xff]
        %v200 = vld [vmem:[%s198 + $0x8] sm:$0xff]
        %203 = vrot.lane.b32.xlu0 %v199, 6
        %v204 = vpop.permute.xlu0 %203
        %205 = vrot.lane.b32.xlu0 %v200, 6
        %v206 = vpop.permute.xlu0 %205
        %vm209 = vcmask 64560
        %210 = vst.msk [vmem:[#allocation2] sm:$0xff] %vm209, %v204
        %211 = vst.msk [vmem:[#allocation2 + $0x8] sm:$0xff] %vm209, %v206
        %s212 = sadd.s32 %s157, 4
        %s213 = scalar_lea.vmem %s155, %s212
        %v214 = vld [vmem:[%s213] sm:$0xff]
        %v215 = vld [vmem:[%s213 + $0x8] sm:$0xff]
        %218 = vrot.lane.b32.xlu0 %v214, 8
        %v219 = vpop.permute.xlu0 %218
        %220 = vrot.lane.b32.xlu0 %v215, 8
        %v221 = vpop.permute.xlu0 %220
        %vm224 = vcmask 80960
        %225 = vst.msk [vmem:[#allocation2] sm:$0xff] %vm224, %v219
        %226 = vst.msk [vmem:[#allocation2 + $0x8] sm:$0xff] %vm224, %v221
        %s227 = sadd.s32 %s157, 5
        %s228 = scalar_lea.vmem %s155, %s227
        %v229 = vld [vmem:[%s228] sm:$0xff]
        %v230 = vld [vmem:[%s228 + $0x8] sm:$0xff]
        %233 = vrot.lane.b32.xlu0 %v229, 10
        %v234 = vpop.permute.xlu0 %233
        %235 = vrot.lane.b32.xlu0 %v230, 10
        %v236 = vpop.permute.xlu0 %235
        %vm239 = vcmask 97360
        %240 = vst.msk [vmem:[#allocation2] sm:$0xff] %vm239, %v234
        %241 = vst.msk [vmem:[#allocation2 + $0x8] sm:$0xff] %vm239, %v236
        %s242 = sadd.s32 %s157, 6
        %s243 = scalar_lea.vmem %s155, %s242
        %v244 = vld [vmem:[%s243] sm:$0xff]
        %v245 = vld [vmem:[%s243 + $0x8] sm:$0xff]
        %248 = vrot.lane.b32.xlu0 %v244, 12
        %v249 = vpop.permute.xlu0 %248
        %250 = vrot.lane.b32.xlu0 %v245, 12
        %v251 = vpop.permute.xlu0 %250
        %vm254 = vcmask 113760
        %255 = vst.msk [vmem:[#allocation2] sm:$0xff] %vm254, %v249
        %256 = vst.msk [vmem:[#allocation2 + $0x8] sm:$0xff] %vm254, %v251
        %s257 = sadd.s32 %s157, 7
        %s258 = scalar_lea.vmem %s155, %s257
        %v259 = vld [vmem:[%s258] sm:$0xff]
        %v260 = vld [vmem:[%s258 + $0x8] sm:$0xff]
        %263 = vrot.lane.b32.xlu0 %v259, 14
        %v264 = vpop.permute.xlu0 %263
        %265 = vrot.lane.b32.xlu0 %v260, 14
        %v266 = vpop.permute.xlu0 %265
        %vm269 = vcmask 130160
        %270 = vst.msk [vmem:[#allocation2] sm:$0xff] %vm269, %v264
        %271 = vst.msk [vmem:[#allocation2 + $0x8] sm:$0xff] %vm269, %v266
        %s272 = sadd.s32 %s157, 8
        %s273 = scalar_lea.vmem %s155, %s272
        %v274 = vld [vmem:[%s273] sm:$0xff]
        %v275 = vld [vmem:[%s273 + $0x8] sm:$0xff]
        %278 = vrot.lane.b32.xlu0 %v274, 16
        %v279 = vpop.permute.xlu0 %278
        %280 = vrot.lane.b32.xlu0 %v275, 16
        %v281 = vpop.permute.xlu0 %280
        %vm284 = vcmask 146560
        %285 = vst.msk [vmem:[#allocation2] sm:$0xff] %vm284, %v279
        %286 = vst.msk [vmem:[#allocation2 + $0x8] sm:$0xff] %vm284, %v281
        %s287 = sadd.s32 %s157, 9
        %s288 = scalar_lea.vmem %s155, %s287
        %v289 = vld [vmem:[%s288] sm:$0xff]
        %v290 = vld [vmem:[%s288 + $0x8] sm:$0xff]
        %293 = vrot.lane.b32.xlu0 %v289, 18
        %v294 = vpop.permute.xlu0 %293
        %295 = vrot.lane.b32.xlu0 %v290, 18
        %v296 = vpop.permute.xlu0 %295
        %vm299 = vcmask 162960
        %300 = vst.msk [vmem:[#allocation2] sm:$0xff] %vm299, %v294
        %301 = vst.msk [vmem:[#allocation2 + $0x8] sm:$0xff] %vm299, %v296
        %s302 = sadd.s32 %s157, 10
        %s303 = scalar_lea.vmem %s155, %s302
        %v304 = vld [vmem:[%s303] sm:$0xff]
        %v305 = vld [vmem:[%s303 + $0x8] sm:$0xff]
        %308 = vrot.lane.b32.xlu0 %v304, 20
        %v309 = vpop.permute.xlu0 %308
        %310 = vrot.lane.b32.xlu0 %v305, 20
        %v311 = vpop.permute.xlu0 %310
        %vm314 = vcmask 179360
        %315 = vst.msk [vmem:[#allocation2] sm:$0xff] %vm314, %v309
        %316 = vst.msk [vmem:[#allocation2 + $0x8] sm:$0xff] %vm314, %v311
        %s317 = sadd.s32 %s157, 11
        %s318 = scalar_lea.vmem %s155, %s317
        %v319 = vld [vmem:[%s318] sm:$0xff]
        %v320 = vld [vmem:[%s318 + $0x8] sm:$0xff]
        %323 = vrot.lane.b32.xlu0 %v319, 22
        %v324 = vpop.permute.xlu0 %323
        %325 = vrot.lane.b32.xlu0 %v320, 22
        %v326 = vpop.permute.xlu0 %325
        %vm329 = vcmask 195760
        %330 = vst.msk [vmem:[#allocation2] sm:$0xff] %vm329, %v324
        %331 = vst.msk [vmem:[#allocation2 + $0x8] sm:$0xff] %vm329, %v326
        %s332 = sadd.s32 %s157, 12
        %s333 = scalar_lea.vmem %s155, %s332
        %v334 = vld [vmem:[%s333] sm:$0xff]
        %v335 = vld [vmem:[%s333 + $0x8] sm:$0xff]
        %338 = vrot.lane.b32.xlu0 %v334, 24
        %v339 = vpop.permute.xlu0 %338
        %340 = vrot.lane.b32.xlu0 %v335, 24
        %v341 = vpop.permute.xlu0 %340
        %vm344 = vcmask 212160
        %345 = vst.msk [vmem:[#allocation2] sm:$0xff] %vm344, %v339
        %346 = vst.msk [vmem:[#allocation2 + $0x8] sm:$0xff] %vm344, %v341
        %s347 = sadd.s32 %s157, 13
        %s348 = scalar_lea.vmem %s155, %s347
        %v349 = vld [vmem:[%s348] sm:$0xff]
        %v350 = vld [vmem:[%s348 + $0x8] sm:$0xff]
        %353 = vrot.lane.b32.xlu0 %v349, 26
        %v354 = vpop.permute.xlu0 %353
        %355 = vrot.lane.b32.xlu0 %v350, 26
        %v356 = vpop.permute.xlu0 %355
        %vm359 = vcmask 228560
        %360 = vst.msk [vmem:[#allocation2] sm:$0xff] %vm359, %v354
        %361 = vst.msk [vmem:[#allocation2 + $0x8] sm:$0xff] %vm359, %v356
        %s362 = sadd.s32 %s157, 14
        %s363 = scalar_lea.vmem %s155, %s362
        %v364 = vld [vmem:[%s363] sm:$0xff]
        %v365 = vld [vmem:[%s363 + $0x8] sm:$0xff]
        %368 = vrot.lane.b32.xlu0 %v364, 28
        %v369 = vpop.permute.xlu0 %368
        %370 = vrot.lane.b32.xlu0 %v365, 28
        %v371 = vpop.permute.xlu0 %370
        %vm374 = vcmask 244960
        %375 = vst.msk [vmem:[#allocation2] sm:$0xff] %vm374, %v369
        %376 = vst.msk [vmem:[#allocation2 + $0x8] sm:$0xff] %vm374, %v371
        %s377 = sadd.s32 %s157, 15
        %s378 = scalar_lea.vmem %s155, %s377
        %v379 = vld [vmem:[%s378] sm:$0xff]
        %v380 = vld [vmem:[%s378 + $0x8] sm:$0xff]
        %383 = vrot.lane.b32.xlu0 %v379, 30
        %v384 = vpop.permute.xlu0 %383
        %385 = vrot.lane.b32.xlu0 %v380, 30
        %v386 = vpop.permute.xlu0 %385
        %vm389 = vcmask 261360
        %390 = vst.msk [vmem:[#allocation2] sm:$0xff] %vm389, %v384
        %391 = vst.msk [vmem:[#allocation2 + $0x8] sm:$0xff] %vm389, %v386
        %s392 = sadd.s32 %s157, 16
        %s393 = scalar_lea.vmem %s155, %s392
        %v394 = vld [vmem:[%s393] sm:$0xff]
        %v395 = vld [vmem:[%s393 + $0x8] sm:$0xff]
        %398 = vrot.lane.b32.xlu0 %v394, 32
        %v399 = vpop.permute.xlu0 %398
        %400 = vrot.lane.b32.xlu0 %v395, 32
        %v401 = vpop.permute.xlu0 %400
        %vm404 = vcmask 277760
        %405 = vst.msk [vmem:[#allocation2] sm:$0xff] %vm404, %v399
        %406 = vst.msk [vmem:[#allocation2 + $0x8] sm:$0xff] %vm404, %v401
        %s407 = sadd.s32 %s157, 17
        %s408 = scalar_lea.vmem %s155, %s407
        %v409 = vld [vmem:[%s408] sm:$0xff]
        %v410 = vld [vmem:[%s408 + $0x8] sm:$0xff]
        %413 = vrot.lane.b32.xlu0 %v409, 34
        %v414 = vpop.permute.xlu0 %413
        %415 = vrot.lane.b32.xlu0 %v410, 34
        %v416 = vpop.permute.xlu0 %415
        %vm419 = vcmask 294160
        %420 = vst.msk [vmem:[#allocation2] sm:$0xff] %vm419, %v414
        %421 = vst.msk [vmem:[#allocation2 + $0x8] sm:$0xff] %vm419, %v416
        %s422 = sadd.s32 %s157, 18
        %s423 = scalar_lea.vmem %s155, %s422
        %v424 = vld [vmem:[%s423] sm:$0xff]
        %v425 = vld [vmem:[%s423 + $0x8] sm:$0xff]
        %428 = vrot.lane.b32.xlu0 %v424, 36
        %v429 = vpop.permute.xlu0 %428
        %430 = vrot.lane.b32.xlu0 %v425, 36
        %v431 = vpop.permute.xlu0 %430
        %vm434 = vcmask 310560
        %435 = vst.msk [vmem:[#allocation2] sm:$0xff] %vm434, %v429
        %436 = vst.msk [vmem:[#allocation2 + $0x8] sm:$0xff] %vm434, %v431
        %s437 = sadd.s32 %s157, 19
        %s438 = scalar_lea.vmem %s155, %s437
        %v439 = vld [vmem:[%s438] sm:$0xff]
        %v440 = vld [vmem:[%s438 + $0x8] sm:$0xff]
        %443 = vrot.lane.b32.xlu0 %v439, 38
        %v444 = vpop.permute.xlu0 %443
        %445 = vrot.lane.b32.xlu0 %v440, 38
        %v446 = vpop.permute.xlu0 %445
        %vm449 = vcmask 326960
        %450 = vst.msk [vmem:[#allocation2] sm:$0xff] %vm449, %v444
        %451 = vst.msk [vmem:[#allocation2 + $0x8] sm:$0xff] %vm449, %v446
        %s452 = sadd.s32 %s157, 20
        %s453 = scalar_lea.vmem %s155, %s452
        %v454 = vld [vmem:[%s453] sm:$0xff]
        %v455 = vld [vmem:[%s453 + $0x8] sm:$0xff]
        %458 = vrot.lane.b32.xlu0 %v454, 40
        %v459 = vpop.permute.xlu0 %458
        %460 = vrot.lane.b32.xlu0 %v455, 40
        %v461 = vpop.permute.xlu0 %460
        %vm464 = vcmask 343360
        %465 = vst.msk [vmem:[#allocation2] sm:$0xff] %vm464, %v459
        %466 = vst.msk [vmem:[#allocation2 + $0x8] sm:$0xff] %vm464, %v461
        %s467 = sadd.s32 %s157, 21
        %s468 = scalar_lea.vmem %s155, %s467
        %v469 = vld [vmem:[%s468] sm:$0xff]
        %v470 = vld [vmem:[%s468 + $0x8] sm:$0xff]
        %473 = vrot.lane.b32.xlu0 %v469, 42
        %v474 = vpop.permute.xlu0 %473
        %475 = vrot.lane.b32.xlu0 %v470, 42
        %v476 = vpop.permute.xlu0 %475
        %vm479 = vcmask 359760
        %480 = vst.msk [vmem:[#allocation2] sm:$0xff] %vm479, %v474
        %481 = vst.msk [vmem:[#allocation2 + $0x8] sm:$0xff] %vm479, %v476
        %s482 = sadd.s32 %s157, 22
        %s483 = scalar_lea.vmem %s155, %s482
        %v484 = vld [vmem:[%s483] sm:$0xff]
        %v485 = vld [vmem:[%s483 + $0x8] sm:$0xff]
        %488 = vrot.lane.b32.xlu0 %v484, 44
        %v489 = vpop.permute.xlu0 %488
        %490 = vrot.lane.b32.xlu0 %v485, 44
        %v491 = vpop.permute.xlu0 %490
        %vm494 = vcmask 376160
        %495 = vst.msk [vmem:[#allocation2] sm:$0xff] %vm494, %v489
        %496 = vst.msk [vmem:[#allocation2 + $0x8] sm:$0xff] %vm494, %v491
        %s497 = sadd.s32 %s157, 23
        %s498 = scalar_lea.vmem %s155, %s497
        %v499 = vld [vmem:[%s498] sm:$0xff]
        %v500 = vld [vmem:[%s498 + $0x8] sm:$0xff]
        %503 = vrot.lane.b32.xlu0 %v499, 46
        %v504 = vpop.permute.xlu0 %503
        %505 = vrot.lane.b32.xlu0 %v500, 46
        %v506 = vpop.permute.xlu0 %505
        %vm509 = vcmask 392560
        %510 = vst.msk [vmem:[#allocation2] sm:$0xff] %vm509, %v504
        %511 = vst.msk [vmem:[#allocation2 + $0x8] sm:$0xff] %vm509, %v506
        %s512 = sadd.s32 %s157, 24
        %s513 = scalar_lea.vmem %s155, %s512
        %v514 = vld [vmem:[%s513] sm:$0xff]
        %v515 = vld [vmem:[%s513 + $0x8] sm:$0xff]
        %518 = vrot.lane.b32.xlu0 %v514, 48
        %v519 = vpop.permute.xlu0 %518
        %520 = vrot.lane.b32.xlu0 %v515, 48
        %v521 = vpop.permute.xlu0 %520
        %vm524 = vcmask 408960
        %525 = vst.msk [vmem:[#allocation2] sm:$0xff] %vm524, %v519
        %526 = vst.msk [vmem:[#allocation2 + $0x8] sm:$0xff] %vm524, %v521
        %s527 = sadd.s32 %s157, 25
        %s528 = scalar_lea.vmem %s155, %s527
        %v529 = vld [vmem:[%s528] sm:$0xff]
        %v530 = vld [vmem:[%s528 + $0x8] sm:$0xff]
        %533 = vrot.lane.b32.xlu0 %v529, 50
        %v534 = vpop.permute.xlu0 %533
        %535 = vrot.lane.b32.xlu0 %v530, 50
        %v536 = vpop.permute.xlu0 %535
        %vm539 = vcmask 425360
        %540 = vst.msk [vmem:[#allocation2] sm:$0xff] %vm539, %v534
        %541 = vst.msk [vmem:[#allocation2 + $0x8] sm:$0xff] %vm539, %v536
        %s542 = sadd.s32 %s157, 26
        %s543 = scalar_lea.vmem %s155, %s542
        %v544 = vld [vmem:[%s543] sm:$0xff]
        %v545 = vld [vmem:[%s543 + $0x8] sm:$0xff]
        %548 = vrot.lane.b32.xlu0 %v544, 52
        %v549 = vpop.permute.xlu0 %548
        %550 = vrot.lane.b32.xlu0 %v545, 52
        %v551 = vpop.permute.xlu0 %550
        %vm554 = vcmask 441760
        %555 = vst.msk [vmem:[#allocation2] sm:$0xff] %vm554, %v549
        %556 = vst.msk [vmem:[#allocation2 + $0x8] sm:$0xff] %vm554, %v551
        %s557 = sadd.s32 %s157, 27
        %s558 = scalar_lea.vmem %s155, %s557
        %v559 = vld [vmem:[%s558] sm:$0xff]
        %v560 = vld [vmem:[%s558 + $0x8] sm:$0xff]
        %563 = vrot.lane.b32.xlu0 %v559, 54
        %v564 = vpop.permute.xlu0 %563
        %565 = vrot.lane.b32.xlu0 %v560, 54
        %v566 = vpop.permute.xlu0 %565
        %vm569 = vcmask 458160
        %570 = vst.msk [vmem:[#allocation2] sm:$0xff] %vm569, %v564
        %571 = vst.msk [vmem:[#allocation2 + $0x8] sm:$0xff] %vm569, %v566
        %s572 = sadd.s32 %s157, 28
        %s573 = scalar_lea.vmem %s155, %s572
        %v574 = vld [vmem:[%s573] sm:$0xff]
        %v575 = vld [vmem:[%s573 + $0x8] sm:$0xff]
        %578 = vrot.lane.b32.xlu0 %v574, 56
        %v579 = vpop.permute.xlu0 %578
        %580 = vrot.lane.b32.xlu0 %v575, 56
        %v581 = vpop.permute.xlu0 %580
        %vm584 = vcmask 474560
        %585 = vst.msk [vmem:[#allocation2] sm:$0xff] %vm584, %v579
        %586 = vst.msk [vmem:[#allocation2 + $0x8] sm:$0xff] %vm584, %v581
        %s587 = sadd.s32 %s157, 29
        %s588 = scalar_lea.vmem %s155, %s587
        %v589 = vld [vmem:[%s588] sm:$0xff]
        %v590 = vld [vmem:[%s588 + $0x8] sm:$0xff]
        %593 = vrot.lane.b32.xlu0 %v589, 58
        %v594 = vpop.permute.xlu0 %593
        %595 = vrot.lane.b32.xlu0 %v590, 58
        %v596 = vpop.permute.xlu0 %595
        %vm599 = vcmask 490960
        %600 = vst.msk [vmem:[#allocation2] sm:$0xff] %vm599, %v594
        %601 = vst.msk [vmem:[#allocation2 + $0x8] sm:$0xff] %vm599, %v596
        %s602 = sadd.s32 %s157, 30
        %s603 = scalar_lea.vmem %s155, %s602
        %v604 = vld [vmem:[%s603] sm:$0xff]
        %v605 = vld [vmem:[%s603 + $0x8] sm:$0xff]
        %608 = vrot.lane.b32.xlu0 %v604, 60
        %v609 = vpop.permute.xlu0 %608
        %610 = vrot.lane.b32.xlu0 %v605, 60
        %v611 = vpop.permute.xlu0 %610
        %vm614 = vcmask 507360
        %615 = vst.msk [vmem:[#allocation2] sm:$0xff] %vm614, %v609
        %616 = vst.msk [vmem:[#allocation2 + $0x8] sm:$0xff] %vm614, %v611
        %v617 = vld [vmem:[#allocation2] sm:$0xff]
        %v618 = vld [vmem:[#allocation2 + $0x8] sm:$0xff]
        %v619 = vld [vmem:[%s1] sm:$0xff]
        %v620 = vld [vmem:[%s1 + $0x8] sm:$0xff]
        %v621 = vld [vmem:[%s1 + $0x10] sm:$0xff]
        %v622 = vld [vmem:[%s1 + $0x18] sm:$0xff]
        %v623 = vld [vmem:[%s1 + $0x20] sm:$0xff]
        %v624 = vld [vmem:[%s1 + $0x28] sm:$0xff]
        %v625 = vld [vmem:[%s1 + $0x30] sm:$0xff]
        %v626 = vld [vmem:[%s1 + $0x38] sm:$0xff]
        %vm627 = vcmask 523264
        %v629 = vsel %vm627, %v617, 0
        %v632 = vsel %vm627, %v618, 0
        %634 = vmatpush.msra.mxu0 0.0
        %635 = vmatpush.msra.mxu0 0.0
        %636 = vmatpush.msra.mxu0 0.0
        %637 = vmatpush.msra.mxu0 0.0
        %638 = vmatpush.msra.mxu0 0.0
        %639 = vmatpush.msra.mxu0 0.0
        %640 = vmatpush.msra.mxu0 0.0
        %641 = vmatpush.msra.mxu0 0.0
        %642 = vmatpush.msra.mxu0 %v626
        %643 = vmatpush.msra.mxu0 %v625
        %644 = vmatpush.msra.mxu0 %v624
        %645 = vmatpush.msra.mxu0 %v623
        %646 = vmatpush.msra.mxu0 %v622
        %647 = vmatpush.msra.mxu0 %v621
        %648 = vmatpush.msra.mxu0 %v620
        %649 = vmatpush.msra.mxu0 %v619
        %650 = vmatmul.f32.gmra.mxu0 %v629
        %v651 = vpop.f32.mrf.mxu0
        %v652 = vadd.f32 0.0, %v651
        %653 = vmatmul.f32.gmra.mxu0 %v632
        %v654 = vpop.f32.mrf.mxu0
        %v655 = vadd.f32 0.0, %v654
        %656 = vdwg.mxu0
        %vm657 = vcmask 261120
        %658 = vst.msk [vmem:[%s150] sm:$0xff] %vm657, %v652
        %659 = vst.msk [vmem:[%s150 + $0x8] sm:$0xff] %vm657, %v655
        %s660 = sand.u32 %s85, 1
        %s661 = scalar_lea.sflag [#allocation4], %s660
        %s662 = sand.u32 %s85, 1
        %s663 = smul.addr %s662, 16
        %s664 = scalar_lea.vmem [#allocation3], %s663
        // Predicated region
        $region29: #{location_layer_forward.1} parent=27 // pred_check
          %p665 = pneg %p95
        $region30: #{location_layer_forward.1} parent=27 // pred_check_branch
          %667 = sbr.rel (%p665) target = $region32
        $region31: #{location_layer_forward.1} parent=27 // pred_region
          %s668 = smul.u32 2, %s21
          %670 = vsyncadd %s661, 0
          %s671 = smul.addr %s20, 2
          %s672 = sadd.s32 %s668, %s671
          %s673 = smul.addr %s672, 8
          %s674 = scalar_lea.hbm %s2, %s673
          %s675 = sshll.u32 %s664, 4
          %s676 = int_to_ptr.vmem [resolvable:$true] %s675
          %s677 = sshll.u32 %s674, 4
          %s678 = int_to_ptr.hbm [resolvable:$true] %s677
          %683 = dma.vmem_to_hbm [thread:$0]  %s676, 256, %s678, %s661, 128, 128, 8
        $region32: #{location_layer_forward.1} parent=27 // pred_fallthru
          _
      $region28: #{location_layer_forward.1} parent=5 // pred_fallthru
        _
      %p684 = scmp.le.s32.totalorder 2, %s11
      // Predicated region
      $region33: #{location_layer_forward.1} parent=5 // pred_check
        %p685 = pneg %p684
      $region34: #{location_layer_forward.1} parent=5 // pred_check_branch
        %687 = sbr.rel (%p685) target = $region36
      $region35: #{location_layer_forward.1} parent=5 // pred_region
        %s688 = ssub.s32 %s11, 2
        // Predicated region
        $region37: #{location_layer_forward.1} parent=35 // pred_check
          %p689 = pneg %p101
        $region38: #{location_layer_forward.1} parent=35 // pred_check_branch
          %691 = sbr.rel (%p689) target = $region40
        $region39: #{location_layer_forward.1} parent=35 // pred_region
          %s692 = sand.u32 %s86, 1
          %s693 = scalar_lea.sflag [#allocation4], %s692
          %s694 = sand.u32 %s86, 1
          %s695 = smul.addr %s694, 16
          %s696 = scalar_lea.vmem [#allocation3], %s695
          %698 = dma.done %s693, 256
        $region40: #{location_layer_forward.1} parent=35 // pred_fallthru
          _
      $region36: #{location_layer_forward.1} parent=5 // pred_fallthru
        _
    $region6: #{location_layer_forward.1} parent=1 // loop_footer
      %s15 = sadd.s32 1, %s11
    $region7: #{location_layer_forward.1} parent=1 // loop_footer_branch
      %10 = sbr.rel target = $region3
    $region8: #{location_layer_forward.1} parent=1 // loop_exit
      _
    %699 = vsyncpa [#allocation4], 1
    %s700 = scalar_lea.sflag [#allocation4], 1
    %701 = vsyncpa %s700, 1

</llo_original>
